<compile_context>
chip_gen: v7x
topology: tpu7x:2x2x1
jax: 0.10.0
libtpu: 0.0.40
codegen_flags: <defaults>
</compile_context>

<pallas_src>
import functools

import jax
import jax.numpy as jnp
import numpy as np
from jax.experimental import pallas as pl
from jax.experimental.pallas import tpu as pltpu

BN_EPS = 1e-5
_NEG = -1e30  # stands in for -inf in the maxpool (SiLU outputs are >= -0.279)


# ------------------------- in-kernel helpers -------------------------

def _shift_cols(y, offset, fill):
    """result[:, n] = y[:, n - offset] where in range, else `fill`.

    `offset` is a static Python int; implemented with static slices + a
    constant filler block (unambiguous semantics, lowers to lane shifts).
    """
    c, n = y.shape
    if offset == 0:
        return y
    k = abs(offset)
    if k >= n:
        return jnp.full((c, n), fill, y.dtype)
    pad = jnp.full((c, k), fill, y.dtype)
    if offset > 0:
        return jnp.concatenate([pad, y[:, : n - k]], axis=1)
    return jnp.concatenate([y[:, k:], pad], axis=1)


def _pool3x3_same_flat(y, W, w_first, w_last):
    """MaxPool2d(k=3, s=1, p=1) on y laid out as (C, H*W), row-major (H, W).

    Separable: max along W (lane shifts by +-1; masks kill the values that
    wrapped across a row boundary), then max along H (lane shifts by +-W; the
    -inf filler handles the h boundaries exactly).  Matches PyTorch's SAME
    boundary behaviour, so chaining three of these reproduces SPPF exactly.
    """
    left = jnp.where(w_first, _NEG, _shift_cols(y, 1, _NEG))
    right = jnp.where(w_last, _NEG, _shift_cols(y, -1, _NEG))
    mw = jnp.maximum(jnp.maximum(y, left), right)
    up = _shift_cols(mw, W, _NEG)
    down = _shift_cols(mw, -W, _NEG)
    return jnp.maximum(jnp.maximum(mw, up), down)


# ------------------------- Pallas kernel -------------------------

def _sppf_kernel(W, x_ref, w1_ref, b1_ref, w2_ref, b2_ref, o_ref):
    """Fused SPPF for one batch image, channels-first flat-spatial layout.

    x_ref:  (1, c1, N)    input image, N = H*W
    w1_ref: (c_, c1)      folded cv1 conv+BN weight
    b1_ref: (c_, 1)       folded cv1 bias
    w2_ref: (4, c2, c_)   folded cv2 conv+BN weight, split along the
                          concatenated-channel axis: [y1, y2, y3, y4]
    b2_ref: (c2, 1)       folded cv2 bias
    o_ref:  (1, c2, N)    output image
    """
    # ---- cv1: 1x1 conv + BN + SiLU as one MXU matmul ----
    xf = x_ref[0].astype(jnp.float32)                     # (c1, N)
    w1 = w1_ref[...].astype(jnp.float32)                  # (c_, c1)
    y1 = jnp.dot(w1, xf, preferred_element_type=jnp.float32)
    y1 = y1 + b1_ref[...].astype(jnp.float32)             # (c_, N) + (c_, 1)
    y1 = y1 * jax.nn.sigmoid(y1)                          # SiLU

    c_, N = y1.shape

    # Row-boundary masks (shared by all three pools; hoisted once).
    w_idx = jax.lax.broadcasted_iota(jnp.int32, (1, N), 1) % W
    w_first = jnp.broadcast_to(w_idx == 0, (c_, N))
    w_last = jnp.broadcast_to(w_idx == (W - 1), (c_, N))

    # ---- three chained 3x3 / s1 / p1 maxpools, fully in registers ----
    y2 = _pool3x3_same_flat(y1, W, w_first, w_last)
    y3 = _pool3x3_same_flat(y2, W, w_first, w_last)
    y4 = _pool3x3_same_flat(y3, W, w_first, w_last)

    # ---- cv2: channel concat folded into 4 matmuls on one f32 accumulator ----
    w2 = w2_ref[...].astype(jnp.float32)                  # (4, c2, c_)
    acc = jnp.dot(w2[0], y1, preferred_element_type=jnp.float32)
    acc = acc + jnp.dot(w2[1], y2, preferred_element_type=jnp.float32)
    acc = acc + jnp.dot(w2[2], y3, preferred_element_type=jnp.float32)
    acc = acc + jnp.dot(w2[3], y4, preferred_element_type=jnp.float32)
    acc = acc + b2_ref[...].astype(jnp.float32)           # (c2, N) + (c2, 1)
    out = acc * jax.nn.sigmoid(acc)                       # SiLU

    o_ref[0] = out.astype(o_ref.dtype)                    # lane-dense store


# ------------------------- wrapper -------------------------

def sppf_forward(x_nchw, params):
    """SPPF forward. x: (B, c1, H, W) NCHW -> (B, c2, H, W) NCHW."""
    B, c1, H, W = x_nchw.shape
    c_ = params['w1'].shape[0]
    c2 = params['w2'].shape[1]
    N = H * W

    xf = x_nchw.reshape(B, c1, N)                          # metadata-only reshape

    out = pl.pallas_call(
        functools.partial(_sppf_kernel, W),
        out_shape=jax.ShapeDtypeStruct((B, c2, N), x_nchw.dtype),
        grid=(B,),
        in_specs=[
            pl.BlockSpec((1, c1, N), lambda b: (b, 0, 0)),
            pl.BlockSpec((c_, c1), lambda b: (0, 0)),
            pl.BlockSpec((c_, 1), lambda b: (0, 0)),
            pl.BlockSpec((4, c2, c_), lambda b: (0, 0, 0)),
            pl.BlockSpec((c2, 1), lambda b: (0, 0)),
        ],
        out_specs=pl.BlockSpec((1, c2, N), lambda b: (b, 0, 0)),
        compiler_params=pltpu.CompilerParams(
            dimension_semantics=("parallel",),
            vmem_limit_bytes=64 * 1024 * 1024,
        ),
    )(xf, params['w1'], params['b1'].reshape(c_, 1),
      params['w2'], params['b2'].reshape(c2, 1))

    return out.reshape(B, c2, H, W)                        # metadata-only reshape


# ------------------------- parameters (deterministic, BN folded) -------------------------

def _fold_bn(w_oihw, gamma, beta, mean, var, eps=BN_EPS):
    scale = gamma / jnp.sqrt(var + eps)
    w_f = w_oihw * scale[:, None, None, None]
    b_f = beta - mean * scale
    return w_f, b_f


def _init_conv_bn(key, cin, cout, k):
    kw_, kg, kb, km, kv = jax.random.split(key, 5)
    w = jax.random.normal(kw_, (cout, cin, k, k), jnp.float32) * 0.1
    gamma = jax.random.uniform(kg, (cout,), jnp.float32, 0.5, 1.5)
    beta = jax.random.normal(kb, (cout,), jnp.float32) * 0.1
    mean = jax.random.normal(km, (cout,), jnp.float32) * 0.1
    var = jax.random.uniform(kv, (cout,), jnp.float32, 0.5, 1.5)
    return _fold_bn(w, gamma, beta, mean, var)


def make_sppf_params(key, c1, c2):
    c_ = c1 // 2
    k1, k2 = jax.random.split(key)
    w1f, b1f = _init_conv_bn(k1, c1, c_, 1)               # cv1: (c_, c1, 1, 1)
    w2f, b2f = _init_conv_bn(k2, 4 * c_, c2, 1)           # cv2: (c2, 4*c_, 1, 1)
    w1 = w1f[:, :, 0, 0]                                  # (c_, c1)
    w2_full = w2f[:, :, 0, 0]                             # (c2, 4*c_)
    w2 = jnp.transpose(w2_full.reshape(c2, 4, c_), (1, 0, 2))   # (4, c2, c_)
    return {'w1': w1, 'b1': b1f, 'w2': w2, 'b2': b2f}


# ------------------------- pure-JAX reference (for verification) -------------------------

def ref_forward(x_nchw, p):
    silu = lambda v: v * jax.nn.sigmoid(v)
    xf = x_nchw.astype(jnp.float32)

    y1 = silu(jnp.einsum('bihw,oi->bohw', xf, p['w1'])
              + p['b1'][None, :, None, None])

    def pool(t):
        return jax.lax.reduce_window(t, -jnp.inf, jax.lax.max,
                                     (1, 1, 3, 3), (1, 1, 1, 1), 'SAME')

    y2 = pool(y1)
    y3 = pool(y2)
    y4 = pool(y3)
    cat = jnp.concatenate([y1, y2, y3, y4], axis=1)
    w2_full = jnp.concatenate([p['w2'][k] for k in range(4)], axis=1)   # (c2, 4*c_)
    out = silu(jnp.einsum('bihw,oi->bohw', cat, w2_full)
               + p['b2'][None, :, None, None])
    return out


# ------------------------- main -------------------------

if __name__ == "__main__":
    key = jax.random.PRNGKey(0)
    kx, kp = jax.random.split(key)

    B, c1, c2, H, W = 2, 16, 32, 16, 16
    x = jax.random.normal(kx, (B, c1, H, W), jnp.float32)   # NCHW, like PyTorch
    params = make_sppf_params(kp, c1, c2)

    out = jax.block_until_ready(sppf_forward(x, params))
    ref = jax.block_until_ready(ref_forward(x, params))

    assert out.shape == (B, c2, H, W), out.shape
    np.testing.assert_allclose(np.asarray(out), np.asarray(ref), rtol=2e-3, atol=2e-3)
    print("KERNEL_OK")
</pallas_src>

<mosaic_0001>
module attributes {stable_mosaic.version = 11 : i64} {
  func.func @_sppf_kernel(%arg0: i32, %arg1: memref<1x16x256xf32, #tpu.memory_space<vmem>>, %arg2: memref<8x16xf32, #tpu.memory_space<vmem>>, %arg3: memref<8x1xf32, #tpu.memory_space<vmem>>, %arg4: memref<4x32x8xf32, #tpu.memory_space<vmem>>, %arg5: memref<32x1xf32, #tpu.memory_space<vmem>>, %arg6: memref<1x32x256xf32, #tpu.memory_space<vmem>>) attributes {dimension_semantics = [#tpu.dimension_semantics<parallel>], iteration_bounds = array<i64: 2>, scalar_prefetch = 0 : i64, scratch_operands = 0 : i64, tpu.core_type = #tpu.core_type<tc>, window_params = [{transform_indices = @transform_0, window_bounds = array<i64: 1, 16, 256>}, {pipeline_mode = #tpu.pipeline_mode<synchronous>, transform_indices = @transform_1, window_bounds = array<i64: 8, 16>}, {pipeline_mode = #tpu.pipeline_mode<synchronous>, transform_indices = @transform_2, window_bounds = array<i64: 8, 1>}, {pipeline_mode = #tpu.pipeline_mode<synchronous>, transform_indices = @transform_3, window_bounds = array<i64: 4, 32, 8>}, {pipeline_mode = #tpu.pipeline_mode<synchronous>, transform_indices = @transform_4, window_bounds = array<i64: 32, 1>}, {transform_indices = @transform_5, window_bounds = array<i64: 1, 32, 256>}]} {
    %c0 = arith.constant 0 : index
    %c0_0 = arith.constant 0 : index
    %c0_1 = arith.constant 0 : index
    %0 = vector.load %arg1[%c0, %c0_0, %c0_1] : memref<1x16x256xf32, #tpu.memory_space<vmem>>, vector<1x16x256xf32>
    %1 = vector.shape_cast %0 : vector<1x16x256xf32> to vector<16x256xf32>
    %c0_2 = arith.constant 0 : index
    %c0_3 = arith.constant 0 : index
    %2 = vector.load %arg2[%c0_2, %c0_3] : memref<8x16xf32, #tpu.memory_space<vmem>>, vector<8x16xf32>
    %cst = arith.constant dense<0.000000e+00> : vector<8x256xf32>
    %3 = tpu.matmul %2, %1, %cst {dimension_numbers = #tpu.dot_dimension_numbers<[1], [0], [0], [1], [0, 0, 1, 1], [], []>} : vector<8x16xf32>, vector<16x256xf32>, vector<8x256xf32> -> vector<8x256xf32>
    %c0_4 = arith.constant 0 : index
    %c0_5 = arith.constant 0 : index
    %4 = vector.load %arg3[%c0_4, %c0_5] : memref<8x1xf32, #tpu.memory_space<vmem>>, vector<8x1xf32>
    %5 = vector.broadcast %4 : vector<8x1xf32> to vector<8x256xf32>
    %6 = arith.addf %3, %5 : vector<8x256xf32>
    %7 = arith.negf %6 : vector<8x256xf32>
    %8 = math.exp %7 : vector<8x256xf32>
    %cst_6 = arith.constant 1.000000e+00 : f32
    %9 = vector.broadcast %cst_6 : f32 to vector<8x256xf32>
    %10 = arith.addf %9, %8 : vector<8x256xf32>
    %11 = arith.divf %9, %10 : vector<8x256xf32>
    %12 = arith.mulf %6, %11 : vector<8x256xf32>
    %13 = tpu.iota {dimensions = array<i32: 1>} : vector<1x256xi32>
    %c16_i32 = arith.constant 16 : i32
    %c0_i32 = arith.constant 0 : i32
    %14 = arith.cmpi eq, %c16_i32, %c0_i32 : i32
    %c1_i32 = arith.constant 1 : i32
    %15 = arith.select %14, %c1_i32, %c16_i32 : i32
    %16 = vector.broadcast %15 : i32 to vector<1x256xi32>
    %17 = arith.remsi %13, %16 : vector<1x256xi32>
    %c0_i32_7 = arith.constant 0 : i32
    %18 = vector.broadcast %c0_i32_7 : i32 to vector<1x256xi32>
    %19 = arith.cmpi ne, %17, %18 : vector<1x256xi32>
    %c0_i32_8 = arith.constant 0 : i32
    %20 = vector.broadcast %c0_i32_8 : i32 to vector<1x256xi32>
    %21 = arith.cmpi slt, %17, %20 : vector<1x256xi32>
    %c0_i32_9 = arith.constant 0 : i32
    %22 = arith.cmpi slt, %15, %c0_i32_9 : i32
    %23 = vector.broadcast %22 : i1 to vector<1x256xi1>
    %24 = vector.broadcast %23 : vector<1x256xi1> to vector<1x256xi1>
    %25 = arith.xori %21, %24 : vector<1x256xi1>
    %26 = arith.andi %25, %19 : vector<1x256xi1>
    %27 = vector.broadcast %15 : i32 to vector<1x256xi32>
    %28 = arith.addi %17, %27 : vector<1x256xi32>
    %29 = arith.select %26, %28, %17 : vector<1x256xi1>, vector<1x256xi32>
    %c0_i32_10 = arith.constant 0 : i32
    %30 = vector.broadcast %c0_i32_10 : i32 to vector<1x256xi32>
    %31 = arith.cmpi eq, %29, %30 : vector<1x256xi32>
    %32 = vector.shape_cast %31 : vector<1x256xi1> to vector<1x256xi1>
    %33 = vector.broadcast %32 : vector<1x256xi1> to vector<8x256xi1>
    %c15_i32 = arith.constant 15 : i32
    %34 = vector.broadcast %c15_i32 : i32 to vector<1x256xi32>
    %35 = arith.cmpi eq, %29, %34 : vector<1x256xi32>
    %36 = vector.shape_cast %35 : vector<1x256xi1> to vector<1x256xi1>
    %37 = vector.broadcast %36 : vector<1x256xi1> to vector<8x256xi1>
    %cst_11 = arith.constant -1.000000e+30 : f32
    %38 = vector.broadcast %cst_11 : f32 to vector<8x1xf32>
    %39 = vector.extract_strided_slice %12 {offsets = [0, 0], sizes = [8, 255], strides = [1, 1]} : vector<8x256xf32> to vector<8x255xf32>
    %40 = tpu.concatenate %38, %39 in 1 : vector<8x1xf32>, vector<8x255xf32> -> vector<8x256xf32>
    %cst_12 = arith.constant -1.000000e+30 : f32
    %41 = vector.broadcast %cst_12 : f32 to vector<8x256xf32>
    %42 = arith.select %33, %41, %40 : vector<8x256xi1>, vector<8x256xf32>
    %cst_13 = arith.constant -1.000000e+30 : f32
    %43 = vector.broadcast %cst_13 : f32 to vector<8x1xf32>
    %44 = vector.extract_strided_slice %12 {offsets = [0, 1], sizes = [8, 255], strides = [1, 1]} : vector<8x256xf32> to vector<8x255xf32>
    %45 = tpu.concatenate %44, %43 in 1 : vector<8x255xf32>, vector<8x1xf32> -> vector<8x256xf32>
    %cst_14 = arith.constant -1.000000e+30 : f32
    %46 = vector.broadcast %cst_14 : f32 to vector<8x256xf32>
    %47 = arith.select %37, %46, %45 : vector<8x256xi1>, vector<8x256xf32>
    %48 = arith.maximumf %12, %42 : vector<8x256xf32>
    %49 = arith.maximumf %48, %47 : vector<8x256xf32>
    %cst_15 = arith.constant -1.000000e+30 : f32
    %50 = vector.broadcast %cst_15 : f32 to vector<8x16xf32>
    %51 = vector.extract_strided_slice %49 {offsets = [0, 0], sizes = [8, 240], strides = [1, 1]} : vector<8x256xf32> to vector<8x240xf32>
    %52 = tpu.concatenate %50, %51 in 1 : vector<8x16xf32>, vector<8x240xf32> -> vector<8x256xf32>
    %cst_16 = arith.constant -1.000000e+30 : f32
    %53 = vector.broadcast %cst_16 : f32 to vector<8x16xf32>
    %54 = vector.extract_strided_slice %49 {offsets = [0, 16], sizes = [8, 240], strides = [1, 1]} : vector<8x256xf32> to vector<8x240xf32>
    %55 = tpu.concatenate %54, %53 in 1 : vector<8x240xf32>, vector<8x16xf32> -> vector<8x256xf32>
    %56 = arith.maximumf %49, %52 : vector<8x256xf32>
    %57 = arith.maximumf %56, %55 : vector<8x256xf32>
    %cst_17 = arith.constant -1.000000e+30 : f32
    %58 = vector.broadcast %cst_17 : f32 to vector<8x1xf32>
    %59 = vector.extract_strided_slice %57 {offsets = [0, 0], sizes = [8, 255], strides = [1, 1]} : vector<8x256xf32> to vector<8x255xf32>
    %60 = tpu.concatenate %58, %59 in 1 : vector<8x1xf32>, vector<8x255xf32> -> vector<8x256xf32>
    %cst_18 = arith.constant -1.000000e+30 : f32
    %61 = vector.broadcast %cst_18 : f32 to vector<8x256xf32>
    %62 = arith.select %33, %61, %60 : vector<8x256xi1>, vector<8x256xf32>
    %cst_19 = arith.constant -1.000000e+30 : f32
    %63 = vector.broadcast %cst_19 : f32 to vector<8x1xf32>
    %64 = vector.extract_strided_slice %57 {offsets = [0, 1], sizes = [8, 255], strides = [1, 1]} : vector<8x256xf32> to vector<8x255xf32>
    %65 = tpu.concatenate %64, %63 in 1 : vector<8x255xf32>, vector<8x1xf32> -> vector<8x256xf32>
    %cst_20 = arith.constant -1.000000e+30 : f32
    %66 = vector.broadcast %cst_20 : f32 to vector<8x256xf32>
    %67 = arith.select %37, %66, %65 : vector<8x256xi1>, vector<8x256xf32>
    %68 = arith.maximumf %57, %62 : vector<8x256xf32>
    %69 = arith.maximumf %68, %67 : vector<8x256xf32>
    %cst_21 = arith.constant -1.000000e+30 : f32
    %70 = vector.broadcast %cst_21 : f32 to vector<8x16xf32>
    %71 = vector.extract_strided_slice %69 {offsets = [0, 0], sizes = [8, 240], strides = [1, 1]} : vector<8x256xf32> to vector<8x240xf32>
    %72 = tpu.concatenate %70, %71 in 1 : vector<8x16xf32>, vector<8x240xf32> -> vector<8x256xf32>
    %cst_22 = arith.constant -1.000000e+30 : f32
    %73 = vector.broadcast %cst_22 : f32 to vector<8x16xf32>
    %74 = vector.extract_strided_slice %69 {offsets = [0, 16], sizes = [8, 240], strides = [1, 1]} : vector<8x256xf32> to vector<8x240xf32>
    %75 = tpu.concatenate %74, %73 in 1 : vector<8x240xf32>, vector<8x16xf32> -> vector<8x256xf32>
    %76 = arith.maximumf %69, %72 : vector<8x256xf32>
    %77 = arith.maximumf %76, %75 : vector<8x256xf32>
    %cst_23 = arith.constant -1.000000e+30 : f32
    %78 = vector.broadcast %cst_23 : f32 to vector<8x1xf32>
    %79 = vector.extract_strided_slice %77 {offsets = [0, 0], sizes = [8, 255], strides = [1, 1]} : vector<8x256xf32> to vector<8x255xf32>
    %80 = tpu.concatenate %78, %79 in 1 : vector<8x1xf32>, vector<8x255xf32> -> vector<8x256xf32>
    %cst_24 = arith.constant -1.000000e+30 : f32
    %81 = vector.broadcast %cst_24 : f32 to vector<8x256xf32>
    %82 = arith.select %33, %81, %80 : vector<8x256xi1>, vector<8x256xf32>
    %cst_25 = arith.constant -1.000000e+30 : f32
    %83 = vector.broadcast %cst_25 : f32 to vector<8x1xf32>
    %84 = vector.extract_strided_slice %77 {offsets = [0, 1], sizes = [8, 255], strides = [1, 1]} : vector<8x256xf32> to vector<8x255xf32>
    %85 = tpu.concatenate %84, %83 in 1 : vector<8x255xf32>, vector<8x1xf32> -> vector<8x256xf32>
    %cst_26 = arith.constant -1.000000e+30 : f32
    %86 = vector.broadcast %cst_26 : f32 to vector<8x256xf32>
    %87 = arith.select %37, %86, %85 : vector<8x256xi1>, vector<8x256xf32>
    %88 = arith.maximumf %77, %82 : vector<8x256xf32>
    %89 = arith.maximumf %88, %87 : vector<8x256xf32>
    %cst_27 = arith.constant -1.000000e+30 : f32
    %90 = vector.broadcast %cst_27 : f32 to vector<8x16xf32>
    %91 = vector.extract_strided_slice %89 {offsets = [0, 0], sizes = [8, 240], strides = [1, 1]} : vector<8x256xf32> to vector<8x240xf32>
    %92 = tpu.concatenate %90, %91 in 1 : vector<8x16xf32>, vector<8x240xf32> -> vector<8x256xf32>
    %cst_28 = arith.constant -1.000000e+30 : f32
    %93 = vector.broadcast %cst_28 : f32 to vector<8x16xf32>
    %94 = vector.extract_strided_slice %89 {offsets = [0, 16], sizes = [8, 240], strides = [1, 1]} : vector<8x256xf32> to vector<8x240xf32>
    %95 = tpu.concatenate %94, %93 in 1 : vector<8x240xf32>, vector<8x16xf32> -> vector<8x256xf32>
    %96 = arith.maximumf %89, %92 : vector<8x256xf32>
    %97 = arith.maximumf %96, %95 : vector<8x256xf32>
    %c0_29 = arith.constant 0 : index
    %c0_30 = arith.constant 0 : index
    %c0_31 = arith.constant 0 : index
    %98 = vector.load %arg4[%c0_29, %c0_30, %c0_31] : memref<4x32x8xf32, #tpu.memory_space<vmem>>, vector<4x32x8xf32>
    %99 = vector.extract_strided_slice %98 {offsets = [0, 0, 0], sizes = [1, 32, 8], strides = [1, 1, 1]} : vector<4x32x8xf32> to vector<1x32x8xf32>
    %100 = vector.shape_cast %99 : vector<1x32x8xf32> to vector<32x8xf32>
    %cst_32 = arith.constant dense<0.000000e+00> : vector<32x256xf32>
    %101 = tpu.matmul %100, %12, %cst_32 {dimension_numbers = #tpu.dot_dimension_numbers<[1], [0], [0], [1], [0, 0, 1, 1], [], []>} : vector<32x8xf32>, vector<8x256xf32>, vector<32x256xf32> -> vector<32x256xf32>
    %102 = vector.extract_strided_slice %98 {offsets = [1, 0, 0], sizes = [1, 32, 8], strides = [1, 1, 1]} : vector<4x32x8xf32> to vector<1x32x8xf32>
    %103 = vector.shape_cast %102 : vector<1x32x8xf32> to vector<32x8xf32>
    %cst_33 = arith.constant dense<0.000000e+00> : vector<32x256xf32>
    %104 = tpu.matmul %103, %57, %cst_33 {dimension_numbers = #tpu.dot_dimension_numbers<[1], [0], [0], [1], [0, 0, 1, 1], [], []>} : vector<32x8xf32>, vector<8x256xf32>, vector<32x256xf32> -> vector<32x256xf32>
    %105 = arith.addf %101, %104 : vector<32x256xf32>
    %106 = vector.extract_strided_slice %98 {offsets = [2, 0, 0], sizes = [1, 32, 8], strides = [1, 1, 1]} : vector<4x32x8xf32> to vector<1x32x8xf32>
    %107 = vector.shape_cast %106 : vector<1x32x8xf32> to vector<32x8xf32>
    %cst_34 = arith.constant dense<0.000000e+00> : vector<32x256xf32>
    %108 = tpu.matmul %107, %77, %cst_34 {dimension_numbers = #tpu.dot_dimension_numbers<[1], [0], [0], [1], [0, 0, 1, 1], [], []>} : vector<32x8xf32>, vector<8x256xf32>, vector<32x256xf32> -> vector<32x256xf32>
    %109 = arith.addf %105, %108 : vector<32x256xf32>
    %110 = vector.extract_strided_slice %98 {offsets = [3, 0, 0], sizes = [1, 32, 8], strides = [1, 1, 1]} : vector<4x32x8xf32> to vector<1x32x8xf32>
    %111 = vector.shape_cast %110 : vector<1x32x8xf32> to vector<32x8xf32>
    %cst_35 = arith.constant dense<0.000000e+00> : vector<32x256xf32>
    %112 = tpu.matmul %111, %97, %cst_35 {dimension_numbers = #tpu.dot_dimension_numbers<[1], [0], [0], [1], [0, 0, 1, 1], [], []>} : vector<32x8xf32>, vector<8x256xf32>, vector<32x256xf32> -> vector<32x256xf32>
    %113 = arith.addf %109, %112 : vector<32x256xf32>
    %c0_36 = arith.constant 0 : index
    %c0_37 = arith.constant 0 : index
    %114 = vector.load %arg5[%c0_36, %c0_37] : memref<32x1xf32, #tpu.memory_space<vmem>>, vector<32x1xf32>
    %115 = vector.broadcast %114 : vector<32x1xf32> to vector<32x256xf32>
    %116 = arith.addf %113, %115 : vector<32x256xf32>
    %117 = arith.negf %116 : vector<32x256xf32>
    %118 = math.exp %117 : vector<32x256xf32>
    %cst_38 = arith.constant 1.000000e+00 : f32
    %119 = vector.broadcast %cst_38 : f32 to vector<32x256xf32>
    %120 = arith.addf %119, %118 : vector<32x256xf32>
    %121 = arith.divf %119, %120 : vector<32x256xf32>
    %122 = arith.mulf %116, %121 : vector<32x256xf32>
    %c0_39 = arith.constant 0 : index
    %c0_40 = arith.constant 0 : index
    %c0_41 = arith.constant 0 : index
    %123 = vector.load %arg6[%c0_39, %c0_40, %c0_41] : memref<1x32x256xf32, #tpu.memory_space<vmem>>, vector<1x32x256xf32>
    %124 = vector.shape_cast %123 : vector<1x32x256xf32> to vector<32x256xf32>
    %125 = vector.shape_cast %122 : vector<32x256xf32> to vector<1x32x256xf32>
    tpu.vector_store %arg6[%c0_39, %c0_40, %c0_41], %125 {strides = array<i32>} : memref<1x32x256xf32, #tpu.memory_space<vmem>>, vector<1x32x256xf32>,
    return
  }
  func.func @transform_0(%arg0: i32) -> (i32, i32, i32) {
    %c0_i32 = arith.constant 0 : i32
    %c0_i32_0 = arith.constant 0 : i32
    %c0_i32_1 = arith.constant 0 : i32
    return %arg0, %c0_i32, %c0_i32_0 : i32, i32, i32
  }
  func.func @transform_1(%arg0: i32) -> (i32, i32) {
    %c0_i32 = arith.constant 0 : i32
    %c0_i32_0 = arith.constant 0 : i32
    %c0_i32_1 = arith.constant 0 : i32
    return %c0_i32, %c0_i32_0 : i32, i32
  }
  func.func @transform_2(%arg0: i32) -> (i32, i32) {
    %c0_i32 = arith.constant 0 : i32
    %c0_i32_0 = arith.constant 0 : i32
    %c0_i32_1 = arith.constant 0 : i32
    return %c0_i32, %c0_i32_0 : i32, i32
  }
  func.func @transform_3(%arg0: i32) -> (i32, i32, i32) {
    %c0_i32 = arith.constant 0 : i32
    %c0_i32_0 = arith.constant 0 : i32
    %c0_i32_1 = arith.constant 0 : i32
    %c0_i32_2 = arith.constant 0 : i32
    return %c0_i32, %c0_i32_0, %c0_i32_1 : i32, i32, i32
  }
  func.func @transform_4(%arg0: i32) -> (i32, i32) {
    %c0_i32 = arith.constant 0 : i32
    %c0_i32_0 = arith.constant 0 : i32
    %c0_i32_1 = arith.constant 0 : i32
    return %c0_i32, %c0_i32_0 : i32, i32
  }
  func.func @transform_5(%arg0: i32) -> (i32, i32, i32) {
    %c0_i32 = arith.constant 0 : i32
    %c0_i32_0 = arith.constant 0 : i32
    %c0_i32_1 = arith.constant 0 : i32
    return %arg0, %c0_i32, %c0_i32_0 : i32, i32, i32
  }
}

</mosaic_0001>

<llo_original>
// kernel: tpu_custom_call.1
$region0: #{tpu_custom_call.1}
  #allocation0 [shape = 'u32[]', space=smem, size = 0x4, offset = 0x4, fixed_abs, tag = 'smem constant byte address 0x4 - core index']
  #allocation1 [shape = 'u32[144,128]{1,0:T(1,128)}', space=vmem, size = 0x12000, scoped, tag = 'internal scratch']
  %s0 = inlined_call_operand.hbm [shape: f32[2,16,256], index: 0, kind: input, shape index: {}]
  %s1 = inlined_call_operand.hbm [shape: f32[8,16], index: 1, kind: input, shape index: {}]
  %s2 = inlined_call_operand.hbm [shape: f32[8,1], index: 2, kind: input, shape index: {}]
  %s3 = inlined_call_operand.hbm [shape: f32[4,32,8], index: 3, kind: input, shape index: {}]
  %s4 = inlined_call_operand.hbm [shape: f32[32,1], index: 4, kind: input, shape index: {}]
  %s5 = inlined_call_operand.hbm [shape: f32[2,32,256], index: 5, kind: output, shape index: {}]
  %s6 = sld [smem:[#allocation0]]
  $region73: #{tpu_custom_call.1} parent=0
    _
  %s8 = ssub.s32 1, %s6
  %s9 = scalar_select 0, %s8, %s6
  $region1: #{tpu_custom_call.1} parent=0
    #allocation2 [shape = 'u8[32768]{0}', space=vmem, size = 0x8000, scoped, tag = 'input window, operand 0']
    #allocation3 [shape = 's32[2]{0}', space=sflag, size = 0x8, scoped, tag = 'scoped memory for tpu_custom_call.1']
    #allocation4 [shape = 's32[2]{0}', space=sflag, size = 0x8, scoped, tag = 'scoped memory for tpu_custom_call.1']
    #allocation5 [shape = 'u8[4096]{0}', space=vmem, size = 0x1000, scoped, tag = 'input window, operand 1, single buffered']
    #allocation6 [shape = 's32[1]{0}', space=sflag, size = 0x4, scoped, tag = 'scoped memory for tpu_custom_call.1']
    #allocation7 [shape = 'u8[4096]{0}', space=vmem, size = 0x1000, scoped, tag = 'input window, operand 2, single buffered']
    #allocation8 [shape = 'u8[65536]{0}', space=vmem, size = 0x10000, scoped, tag = 'input window, operand 3, single buffered']
    #allocation9 [shape = 's32[1]{0}', space=sflag, size = 0x4, scoped, tag = 'scoped memory for tpu_custom_call.1']
    #allocation10 [shape = 'u8[16384]{0}', space=vmem, size = 0x4000, scoped, tag = 'input window, operand 4, single buffered']
    #allocation11 [shape = 'u8[65536]{0}', space=vmem, size = 0x10000, scoped, tag = 'output window, operand 0']
    %10 = vsyncpa [#allocation3], 0
    %s11 = scalar_lea.sflag [#allocation3], 1
    %12 = vsyncpa %s11, 0
    %13 = vsyncpa [#allocation6], 0
    %14 = vsyncpa [#allocation9], 0
    %15 = vsyncpa [#allocation4], 0
    %s16 = scalar_lea.sflag [#allocation4], 1
    %17 = vsyncpa %s16, 0
    loop: start=0, step=1, limit=4
    $region2: #{tpu_custom_call.1} parent=1 // loop_pre_header
      _
    $region3: #{tpu_custom_call.1} parent=1 // loop_header
      %s19 = sphi 0, %s23
      %p20 = scmp.ge.s32.totalorder %s19, 4
      %s29 = sphi 0, %s31
      %s32 = sphi 0, %s29
      %s33 = sphi 0, %s32
      %s49 = sphi 0, %s33
      %s53 = sphi 0, %s53
      %s55 = sphi 0, %s53
      %s56 = sphi 0, %s55
      %s70 = sphi 0, %s56
      %s74 = sphi 0, %s74
      %s76 = sphi 0, %s74
      %s77 = sphi 0, %s76
      %s91 = sphi 0, %s77
      %s95 = sphi 0, %s95
      %s97 = sphi 0, %s95
      %s98 = sphi 0, %s97
      %s112 = sphi 0, %s98
      %s116 = sphi 0, %s116
      %s118 = sphi 0, %s116
      %s119 = sphi 0, %s118
      %s133 = sphi 0, %s119
      %s139 = sphi 0, %s141
      %s142 = sphi 0, %s139
      %s143 = sphi 0, %s142
      %s159 = sphi 0, %s143
    $region4: #{tpu_custom_call.1} parent=1 // loop_header_branch
      %22 = sbr.rel (%p20) target = $region8
    $region5: #{tpu_custom_call.1} parent=1 // loop_body
      %s24 = ssub.s32 %s19, 1
      %s25 = ssub.s32 %s19, 2
      %s26 = sadd.s32 %s19, 1
      %s27 = ssub.s32 %s19, %s26
      %p28 = scmp.eq.s32.totalorder %s27, 0
      %s30 = sadd.s32 %s29, 1
      %s31 = scalar_select %p28, %s29, %s30
      %p34 = pneg %p28
      %p35 = scmp.eq.s32.totalorder %s19, 1
      %p36 = por %p34, %p35
      %p37 = scmp.ne.s32.totalorder %s29, %s32
      %p38 = scmp.eq.s32.totalorder %s19, 0
      %p39 = por %p37, %p38
      %p40 = scmp.ne.s32.totalorder %s29, %s32
      %p41 = scmp.eq.s32.totalorder %s24, 1
      %p42 = por %p40, %p41
      %p43 = scmp.ne.s32.totalorder %s32, %s33
      %p44 = scmp.eq.s32.totalorder %s24, 0
      %p45 = por %p43, %p44
      %p46 = scmp.ne.s32.totalorder %s32, %s33
      %p47 = scmp.eq.s32.totalorder %s25, 1
      %p48 = por %p46, %p47
      %p50 = scmp.ne.s32.totalorder %s33, %s49
      %p51 = scmp.eq.s32.totalorder %s25, 0
      %p52 = por %p50, %p51
      %s54 = sadd.s32 %s53, 1
      %p57 = scmp.eq.s32.totalorder %s19, 1
      %p58 = scmp.ne.s32.totalorder %s53, %s55
      %p59 = scmp.eq.s32.totalorder %s19, 0
      %p60 = por %p58, %p59
      %p61 = scmp.ne.s32.totalorder %s53, %s55
      %p62 = scmp.eq.s32.totalorder %s24, 1
      %p63 = por %p61, %p62
      %p64 = scmp.ne.s32.totalorder %s55, %s56
      %p65 = scmp.eq.s32.totalorder %s24, 0
      %p66 = por %p64, %p65
      %p67 = scmp.ne.s32.totalorder %s55, %s56
      %p68 = scmp.eq.s32.totalorder %s25, 1
      %p69 = por %p67, %p68
      %p71 = scmp.ne.s32.totalorder %s56, %s70
      %p72 = scmp.eq.s32.totalorder %s25, 0
      %p73 = por %p71, %p72
      %s75 = sadd.s32 %s74, 1
      %p78 = scmp.eq.s32.totalorder %s19, 1
      %p79 = scmp.ne.s32.totalorder %s74, %s76
      %p80 = scmp.eq.s32.totalorder %s19, 0
      %p81 = por %p79, %p80
      %p82 = scmp.ne.s32.totalorder %s74, %s76
      %p83 = scmp.eq.s32.totalorder %s24, 1
      %p84 = por %p82, %p83
      %p85 = scmp.ne.s32.totalorder %s76, %s77
      %p86 = scmp.eq.s32.totalorder %s24, 0
      %p87 = por %p85, %p86
      %p88 = scmp.ne.s32.totalorder %s76, %s77
      %p89 = scmp.eq.s32.totalorder %s25, 1
      %p90 = por %p88, %p89
      %p92 = scmp.ne.s32.totalorder %s77, %s91
      %p93 = scmp.eq.s32.totalorder %s25, 0
      %p94 = por %p92, %p93
      %s96 = sadd.s32 %s95, 1
      %p99 = scmp.eq.s32.totalorder %s19, 1
      %p100 = scmp.ne.s32.totalorder %s95, %s97
      %p101 = scmp.eq.s32.totalorder %s19, 0
      %p102 = por %p100, %p101
      %p103 = scmp.ne.s32.totalorder %s95, %s97
      %p104 = scmp.eq.s32.totalorder %s24, 1
      %p105 = por %p103, %p104
      %p106 = scmp.ne.s32.totalorder %s97, %s98
      %p107 = scmp.eq.s32.totalorder %s24, 0
      %p108 = por %p106, %p107
      %p109 = scmp.ne.s32.totalorder %s97, %s98
      %p110 = scmp.eq.s32.totalorder %s25, 1
      %p111 = por %p109, %p110
      %p113 = scmp.ne.s32.totalorder %s98, %s112
      %p114 = scmp.eq.s32.totalorder %s25, 0
      %p115 = por %p113, %p114
      %s117 = sadd.s32 %s116, 1
      %p120 = scmp.eq.s32.totalorder %s19, 1
      %p121 = scmp.ne.s32.totalorder %s116, %s118
      %p122 = scmp.eq.s32.totalorder %s19, 0
      %p123 = por %p121, %p122
      %p124 = scmp.ne.s32.totalorder %s116, %s118
      %p125 = scmp.eq.s32.totalorder %s24, 1
      %p126 = por %p124, %p125
      %p127 = scmp.ne.s32.totalorder %s118, %s119
      %p128 = scmp.eq.s32.totalorder %s24, 0
      %p129 = por %p127, %p128
      %p130 = scmp.ne.s32.totalorder %s118, %s119
      %p131 = scmp.eq.s32.totalorder %s25, 1
      %p132 = por %p130, %p131
      %p134 = scmp.ne.s32.totalorder %s119, %s133
      %p135 = scmp.eq.s32.totalorder %s25, 0
      %p136 = por %p134, %p135
      %s137 = ssub.s32 %s19, %s26
      %p138 = scmp.eq.s32.totalorder %s137, 0
      %s140 = sadd.s32 %s139, 1
      %s141 = scalar_select %p138, %s139, %s140
      %p144 = pneg %p138
      %p145 = scmp.eq.s32.totalorder %s19, 1
      %p146 = por %p144, %p145
      %p147 = scmp.ne.s32.totalorder %s139, %s142
      %p148 = scmp.eq.s32.totalorder %s19, 0
      %p149 = por %p147, %p148
      %p150 = scmp.ne.s32.totalorder %s139, %s142
      %p151 = scmp.eq.s32.totalorder %s24, 1
      %p152 = por %p150, %p151
      %p153 = scmp.ne.s32.totalorder %s142, %s143
      %p154 = scmp.eq.s32.totalorder %s24, 0
      %p155 = por %p153, %p154
      %p156 = scmp.ne.s32.totalorder %s142, %s143
      %p157 = scmp.eq.s32.totalorder %s25, 1
      %p158 = por %p156, %p157
      %p160 = scmp.ne.s32.totalorder %s143, %s159
      %p161 = scmp.eq.s32.totalorder %s25, 0
      %p162 = por %p160, %p161
      %p163 = scmp.le.s32.totalorder 1, %s19
      %p164 = scmp.lt.s32.totalorder %s19, 3
      %p165 = pnand %p163, %p164
      %p166 = pneg %p165
      // Predicated region
      $region9: #{tpu_custom_call.1} parent=5 // pred_check
        _
      $region10: #{tpu_custom_call.1} parent=5 // pred_check_branch
        %168 = sbr.rel (%p165) target = $region12
      $region11: #{tpu_custom_call.1} parent=5 // pred_region
        %s169 = ssub.s32 %s19, 1
        // Predicated region
        $region13: #{tpu_custom_call.1} parent=11 // pred_check
          %p170 = pneg %p66
        $region14: #{tpu_custom_call.1} parent=11 // pred_check_branch
          %172 = sbr.rel (%p170) target = $region16
        $region15: #{tpu_custom_call.1} parent=11 // pred_region
          %s174 = ssub.s32 128, 128
          %175 = vsyncadd [#allocation6], %s174
          %s177 = sshll.u32 [#allocation5], 4
          %s178 = int_to_ptr.vmem [resolvable:$true] %s177
          %180 = dma.hbm_to_vmem [thread:$0]  %s1, 128, %s178, [#allocation6]
        $region16: #{tpu_custom_call.1} parent=11 // pred_fallthru
          _
        // Predicated region
        $region17: #{tpu_custom_call.1} parent=11 // pred_check
          %p181 = pneg %p87
        $region18: #{tpu_custom_call.1} parent=11 // pred_check_branch
          %183 = sbr.rel (%p181) target = $region20
        $region19: #{tpu_custom_call.1} parent=11 // pred_region
          %s185 = ssub.s32 128, 128
          %186 = vsyncadd [#allocation6], %s185
          %s188 = sshll.u32 [#allocation7], 4
          %s189 = int_to_ptr.vmem [resolvable:$true] %s188
          %191 = dma.hbm_to_vmem [thread:$0]  %s2, 128, %s189, [#allocation6]
        $region20: #{tpu_custom_call.1} parent=11 // pred_fallthru
          _
        // Predicated region
        $region21: #{tpu_custom_call.1} parent=11 // pred_check
          %p192 = pneg %p108
        $region22: #{tpu_custom_call.1} parent=11 // pred_check_branch
          %194 = sbr.rel (%p192) target = $region24
        $region23: #{tpu_custom_call.1} parent=11 // pred_region
          %s196 = ssub.s32 2048, 2048
          %197 = vsyncadd [#allocation9], %s196
          %s198 = sshll.u32 [#allocation8], 4
          %s199 = int_to_ptr.vmem [resolvable:$true] %s198
          %204 = dma.hbm_to_vmem [thread:$0]  %s3, 2048, %s199, [#allocation9], 128, 128, 8
        $region24: #{tpu_custom_call.1} parent=11 // pred_fallthru
          _
        // Predicated region
        $region25: #{tpu_custom_call.1} parent=11 // pred_check
          %p205 = pneg %p129
        $region26: #{tpu_custom_call.1} parent=11 // pred_check_branch
          %207 = sbr.rel (%p205) target = $region28
        $region27: #{tpu_custom_call.1} parent=11 // pred_region
          %s209 = ssub.s32 512, 512
          %210 = vsyncadd [#allocation9], %s209
          %s211 = sshll.u32 [#allocation10], 4
          %s212 = int_to_ptr.vmem [resolvable:$true] %s211
          %217 = dma.hbm_to_vmem [thread:$0]  %s4, 512, %s212, [#allocation9], 128, 128, 8
        $region28: #{tpu_custom_call.1} parent=11 // pred_fallthru
          _
      $region12: #{tpu_custom_call.1} parent=5 // pred_fallthru
        _
      %p218 = scmp.lt.s32.totalorder %s19, 2
      // Predicated region
      $region29: #{tpu_custom_call.1} parent=5 // pred_check
        %p219 = pneg %p218
      $region30: #{tpu_custom_call.1} parent=5 // pred_check_branch
        %221 = sbr.rel (%p219) target = $region32
      $region31: #{tpu_custom_call.1} parent=5 // pred_region
        // Predicated region
        $region33: #{tpu_custom_call.1} parent=31 // pred_check
          %p222 = pneg %p39
        $region34: #{tpu_custom_call.1} parent=31 // pred_check_branch
          %224 = sbr.rel (%p222) target = $region36
        $region35: #{tpu_custom_call.1} parent=31 // pred_region
          %s225 = sand.u32 %s29, 1
          %s226 = scalar_lea.sflag [#allocation3], %s225
          %s227 = sand.u32 %s29, 1
          %s228 = smul.addr %s227, 32
          %s229 = scalar_lea.vmem [#allocation2], %s228
          %s231 = ssub.s32 512, 512
          %232 = vsyncadd %s226, %s231
          %s233 = smul.addr %s19, 4
          %s234 = smul.addr %s233, 128
          %s235 = scalar_lea.hbm %s0, %s234
          %s236 = sshll.u32 %s229, 4
          %s237 = int_to_ptr.vmem [resolvable:$true] %s236
          %242 = dma.hbm_to_vmem [thread:$0]  %s235, 512, %s237, %s226, 256, 256, 16
        $region36: #{tpu_custom_call.1} parent=31 // pred_fallthru
          _
      $region32: #{tpu_custom_call.1} parent=5 // pred_fallthru
        _
      %p243 = scmp.le.s32.totalorder 1, %s19
      %p244 = scmp.lt.s32.totalorder %s19, 3
      %p245 = pnand %p243, %p244
      %p246 = pneg %p245
      // Predicated region
      $region37: #{tpu_custom_call.1} parent=5 // pred_check
        _
      $region38: #{tpu_custom_call.1} parent=5 // pred_check_branch
        %248 = sbr.rel (%p245) target = $region40
      $region39: #{tpu_custom_call.1} parent=5 // pred_region
        %s249 = ssub.s32 %s19, 1
        %s250 = sand.u32 %s32, 1
        %s251 = scalar_lea.sflag [#allocation3], %s250
        %s252 = sand.u32 %s32, 1
        %s253 = smul.addr %s252, 32
        %s254 = scalar_lea.vmem [#allocation2], %s253
        // Predicated region
        $region41: #{tpu_custom_call.1} parent=39 // pred_check
          %p255 = pneg %p45
        $region42: #{tpu_custom_call.1} parent=39 // pred_check_branch
          %257 = sbr.rel (%p255) target = $region44
        $region43: #{tpu_custom_call.1} parent=39 // pred_region
          %258 = dma.done %s251, 512
        $region44: #{tpu_custom_call.1} parent=39 // pred_fallthru
          _
        // Predicated region
        $region45: #{tpu_custom_call.1} parent=39 // pred_check
          %p259 = pneg %p66
        $region46: #{tpu_custom_call.1} parent=39 // pred_check_branch
          %261 = sbr.rel (%p259) target = $region48
        $region47: #{tpu_custom_call.1} parent=39 // pred_region
          %262 = dma.done [#allocation6], 128
        $region48: #{tpu_custom_call.1} parent=39 // pred_fallthru
          _
        // Predicated region
        $region49: #{tpu_custom_call.1} parent=39 // pred_check
          %p263 = pneg %p87
        $region50: #{tpu_custom_call.1} parent=39 // pred_check_branch
          %265 = sbr.rel (%p263) target = $region52
        $region51: #{tpu_custom_call.1} parent=39 // pred_region
          %266 = dma.done [#allocation6], 128
        $region52: #{tpu_custom_call.1} parent=39 // pred_fallthru
          _
        // Predicated region
        $region53: #{tpu_custom_call.1} parent=39 // pred_check
          %p267 = pneg %p108
        $region54: #{tpu_custom_call.1} parent=39 // pred_check_branch
          %269 = sbr.rel (%p267) target = $region56
        $region55: #{tpu_custom_call.1} parent=39 // pred_region
          %270 = dma.done [#allocation9], 2048
        $region56: #{tpu_custom_call.1} parent=39 // pred_fallthru
          _
        // Predicated region
        $region57: #{tpu_custom_call.1} parent=39 // pred_check
          %p271 = pneg %p129
        $region58: #{tpu_custom_call.1} parent=39 // pred_check_branch
          %273 = sbr.rel (%p271) target = $region60
        $region59: #{tpu_custom_call.1} parent=39 // pred_region
          %274 = dma.done [#allocation9], 512
        $region60: #{tpu_custom_call.1} parent=39 // pred_fallthru
          _
        %s275 = sand.u32 %s32, 1
        %s276 = scalar_lea.sflag [#allocation3], %s275
        %s277 = sand.u32 %s32, 1
        %s278 = smul.addr %s277, 32
        %s279 = scalar_lea.vmem [#allocation2], %s278
        %p280 = pneg %p45
        %p281 = pneg %p42
        %p282 = pneg %p66
        %p283 = pneg %p63
        %p284 = pneg %p87
        %p285 = pneg %p84
        %p286 = pneg %p108
        %p287 = pneg %p105
        %p288 = pneg %p129
        %p289 = pneg %p126
        %p290 = pneg %p155
        %p291 = pneg %p152
        %s292 = sand.u32 %s142, 1
        %s293 = scalar_lea.sflag [#allocation4], %s292
        %s294 = sand.u32 %s142, 1
        %s295 = smul.addr %s294, 64
        %s296 = scalar_lea.vmem [#allocation11], %s295
        %v297 = vld [vmem:[%s254] sm:$0xff]
        %v298 = vld [vmem:[%s254 + $0x8] sm:$0xff]
        %v299 = vld [vmem:[%s254 + $0x10] sm:$0xff]
        %v300 = vld [vmem:[%s254 + $0x18] sm:$0xff]
        %v301 = vld [vmem:[#allocation5] sm:$0xff]
        %v302 = vld [vmem:[#allocation7] sm:$0xff]
        %304 = vset.pattern.permute.xlu0 0
        %305 = vperm.xlu0 %304, %v302
        %v306 = vpop.permute.xlu0 %305
        %vm308 = vcmask 130048
        %v310 = vsel %vm308, %v301, 0
        %312 = vmatprep.subr.mxu0 %v298
        %313 = vmatpush1.msra.mxu0 %v297
        %314 = vmatprep.subr.mxu0 %v300
        %315 = vmatpush1.msra.mxu0 %v299
        %316 = vmatprep.subr.mxu0 0.0
        %317 = vmatpush1.msra.mxu0 0.0
        %318 = vmatprep.subr.mxu0 0.0
        %319 = vmatpush1.msra.mxu0 0.0
        %320 = vmatprep.subr.mxu0 0.0
        %321 = vmatpush1.msra.mxu0 0.0
        %322 = vmatprep.subr.mxu0 0.0
        %323 = vmatpush1.msra.mxu0 0.0
        %324 = vmatprep.subr.mxu0 0.0
        %325 = vmatpush1.msra.mxu0 0.0
        %326 = vmatprep.subr.mxu0 0.0
        %327 = vmatpush1.msra.mxu0 0.0
        %328 = vmatprep.subr.mxu0 0.0
        %329 = vmatpush1.msra.mxu0 0.0
        %330 = vmatprep.subr.mxu0 0.0
        %331 = vmatpush1.msra.mxu0 0.0
        %332 = vmatprep.subr.mxu0 0.0
        %333 = vmatpush1.msra.mxu0 0.0
        %334 = vmatprep.subr.mxu0 0.0
        %335 = vmatpush1.msra.mxu0 0.0
        %336 = vmatprep.subr.mxu0 0.0
        %337 = vmatpush1.msra.mxu0 0.0
        %338 = vmatprep.subr.mxu0 0.0
        %339 = vmatpush1.msra.mxu0 0.0
        %340 = vmatprep.subr.mxu0 0.0
        %341 = vmatpush1.msra.mxu0 0.0
        %342 = vmatprep.subr.mxu0 0.0
        %343 = vmatpush1.msra.mxu0 0.0
        %344 = vmatprep.subr.mxu0 0.0
        %345 = vmatpush1.msra.mxu0 0.0
        %346 = vmatprep.subr.mxu0 0.0
        %347 = vmatpush1.msra.mxu0 0.0
        %348 = vmatprep.subr.mxu0 0.0
        %349 = vmatpush1.msra.mxu0 0.0
        %350 = vmatprep.subr.mxu0 0.0
        %351 = vmatpush1.msra.mxu0 0.0
        %352 = vmatprep.subr.mxu0 0.0
        %353 = vmatpush1.msra.mxu0 0.0
        %354 = vmatprep.subr.mxu0 0.0
        %355 = vmatpush1.msra.mxu0 0.0
        %356 = vmatprep.subr.mxu0 0.0
        %357 = vmatpush1.msra.mxu0 0.0
        %358 = vmatprep.subr.mxu0 0.0
        %359 = vmatpush1.msra.mxu0 0.0
        %360 = vmatprep.subr.mxu0 0.0
        %361 = vmatpush1.msra.mxu0 0.0
        %362 = vmatprep.subr.mxu0 0.0
        %363 = vmatpush1.msra.mxu0 0.0
        %364 = vmatprep.subr.mxu0 0.0
        %365 = vmatpush1.msra.mxu0 0.0
        %366 = vmatprep.subr.mxu0 0.0
        %367 = vmatpush1.msra.mxu0 0.0
        %368 = vmatprep.subr.mxu0 0.0
        %369 = vmatpush1.msra.mxu0 0.0
        %370 = vmatprep.subr.mxu0 0.0
        %371 = vmatpush1.msra.mxu0 0.0
        %372 = vmatprep.subr.mxu0 0.0
        %373 = vmatpush1.msra.mxu0 0.0
        %374 = vmatprep.subr.mxu0 0.0
        %375 = vmatpush1.msra.mxu0 0.0
        %376 = vmatprep.mubr.f32.mxu0 0.0
        %377 = vmatmul.mubr.f32.gmra.mrb[0].mxu0 %v310
        %v378 = vpop.f32.mrb[0].mxu0
        %v379 = vadd.f32 %v306, %v378
        %v380 = vpop.f32.mrb[0].mxu0
        %v381 = vadd.f32 %v306, %v380
        %382 = vdwg.mxu0
        %v383 = vxor.u32 %v379, 2147483648
        %v384 = vxor.u32 %v381, 2147483648
        %v385 = vmul.f32 %v383, 1.442695
        %v386 = vpow.pop %v385
        %v387 = vmul.f32 %v384, 1.442695
        %v388 = vpow.pop %v387
        %v389 = vadd.f32 %v386, 1.0
        %v390 = vadd.f32 %v388, 1.0
        %v391 = vrcp.pop %v389
        %v392 = vmul.f32 1.0, %v391
        %v393 = vrcp.pop %v390
        %v394 = vmul.f32 1.0, %v393
        %v395 = vmul.f32 %v379, %v392
        %v396 = vmul.f32 %v381, %v394
        %v397 = vlaneseq
        %v398 = vand.u32 %v397, 127
        %v399 = vadd.s32 %v398, 128
        %vm400 = vcmp.lt.s32.totalorder %v398, 0
        %v401 = vsub.s32 0, %v398
        %v402 = vsel %vm400, %v401, %v398
        %v403 = vshrl.u32 %v402, 4
        %v404 = vand.u32 %v402, 15
        %v405 = vsub.s32 0, %v404
        %v406 = vsel %vm400, %v405, %v404
        %vm407 = vcmp.lt.s32.totalorder %v399, 0
        %v408 = vsub.s32 0, %v399
        %v409 = vsel %vm407, %v408, %v399
        %v410 = vshrl.u32 %v409, 4
        %v411 = vand.u32 %v409, 15
        %v412 = vsub.s32 0, %v411
        %v413 = vsel %vm407, %v412, %v411
        %vm414 = vcmp.ne.s32.totalorder %v406, 0
        %vm415 = vcmp.ne.s32.totalorder %v413, 0
        %vm416 = vcmp.lt.s32.totalorder %v406, 0
        %vm417 = vcmp.lt.s32.totalorder %v413, 0
        %vm418 = vmand %vm416, %vm414
        %vm419 = vmand %vm417, %vm415
        %v420 = vadd.s32 %v406, 16
        %v421 = vadd.s32 %v413, 16
        %v422 = vsel %vm418, %v420, %v406
        %v423 = vsel %vm419, %v421, %v413
        %vm424 = vcmp.eq.s32.totalorder %v422, 0
        %vm425 = vcmp.eq.s32.totalorder %v423, 0
        %v426 = vsel %vm424, 1, 0
        %v427 = vsel %vm425, 1, 0
        %vm428 = vcmp.eq.s32.totalorder %v426, 1
        %vm429 = vcmp.eq.s32.totalorder %v427, 1
        %vm430 = vcmp.eq.s32.totalorder %v422, 15
        %vm431 = vcmp.eq.s32.totalorder %v423, 15
        %v432 = vsel %vm430, 1, 0
        %v433 = vsel %vm431, 1, 0
        %vm434 = vcmp.eq.s32.totalorder %v432, 1
        %vm435 = vcmp.eq.s32.totalorder %v433, 1
        %438 = vrot.lane.b32.xlu0 %v395, 1
        %v439 = vpop.permute.xlu0 %438
        %440 = vrot.lane.b32.xlu0 %v396, 1
        %v441 = vpop.permute.xlu0 %440
        %vm442 = vcmask 7168
        %v443 = vsel %vm442, %v439, %v441
        %v446 = vsel %vm442, -1e+30, %v439
        %v447 = vsel %vm428, -1e+30, %v446
        %v448 = vsel %vm429, -1e+30, %v443
        %449 = vrot.lane.b32.xlu0 %v395, 127
        %v450 = vpop.permute.xlu0 %449
        %451 = vrot.lane.b32.xlu0 %v396, 127
        %v452 = vpop.permute.xlu0 %451
        %vm453 = vcmask 1039360
        %v454 = vsel %vm453, %v450, %v452
        %v457 = vsel %vm453, %v452, -1e+30
        %v458 = vsel %vm434, -1e+30, %v454
        %v459 = vsel %vm435, -1e+30, %v457
        %v460 = vmax.f32 %v395, %v447
        %v461 = vmax.f32 %v396, %v448
        %v462 = vmax.f32 %v460, %v458
        %v463 = vmax.f32 %v461, %v459
        %466 = vrot.lane.b32.xlu0 %v462, 16
        %v467 = vpop.permute.xlu0 %466
        %468 = vrot.lane.b32.xlu0 %v463, 16
        %v469 = vpop.permute.xlu0 %468
        %v470 = vsel %vm308, %v467, %v469
        %v473 = vsel %vm308, -1e+30, %v467
        %474 = vrot.lane.b32.xlu0 %v462, 112
        %v475 = vpop.permute.xlu0 %474
        %476 = vrot.lane.b32.xlu0 %v463, 112
        %v477 = vpop.permute.xlu0 %476
        %vm478 = vcmask 916480
        %v479 = vsel %vm478, %v475, %v477
        %v482 = vsel %vm478, %v477, -1e+30
        %v483 = vmax.f32 %v462, %v473
        %v484 = vmax.f32 %v463, %v470
        %v485 = vmax.f32 %v483, %v479
        %v486 = vmax.f32 %v484, %v482
        %489 = vrot.lane.b32.xlu0 %v485, 1
        %v490 = vpop.permute.xlu0 %489
        %491 = vrot.lane.b32.xlu0 %v486, 1
        %v492 = vpop.permute.xlu0 %491
        %v493 = vsel %vm442, %v490, %v492
        %v496 = vsel %vm442, -1e+30, %v490
        %v497 = vsel %vm428, -1e+30, %v496
        %v498 = vsel %vm429, -1e+30, %v493
        %499 = vrot.lane.b32.xlu0 %v485, 127
        %v500 = vpop.permute.xlu0 %499
        %501 = vrot.lane.b32.xlu0 %v486, 127
        %v502 = vpop.permute.xlu0 %501
        %v503 = vsel %vm453, %v500, %v502
        %v506 = vsel %vm453, %v502, -1e+30
        %v507 = vsel %vm434, -1e+30, %v503
        %v508 = vsel %vm435, -1e+30, %v506
        %v509 = vmax.f32 %v485, %v497
        %v510 = vmax.f32 %v486, %v498
        %v511 = vmax.f32 %v509, %v507
        %v512 = vmax.f32 %v510, %v508
        %515 = vrot.lane.b32.xlu0 %v511, 16
        %v516 = vpop.permute.xlu0 %515
        %517 = vrot.lane.b32.xlu0 %v512, 16
        %v518 = vpop.permute.xlu0 %517
        %v519 = vsel %vm308, %v516, %v518
        %v522 = vsel %vm308, -1e+30, %v516
        %523 = vrot.lane.b32.xlu0 %v511, 112
        %v524 = vpop.permute.xlu0 %523
        %525 = vrot.lane.b32.xlu0 %v512, 112
        %v526 = vpop.permute.xlu0 %525
        %v527 = vsel %vm478, %v524, %v526
        %v530 = vsel %vm478, %v526, -1e+30
        %v531 = vmax.f32 %v511, %v522
        %v532 = vmax.f32 %v512, %v519
        %v533 = vmax.f32 %v531, %v527
        %v534 = vmax.f32 %v532, %v530
        %537 = vrot.lane.b32.xlu0 %v533, 1
        %v538 = vpop.permute.xlu0 %537
        %539 = vrot.lane.b32.xlu0 %v534, 1
        %v540 = vpop.permute.xlu0 %539
        %v541 = vsel %vm442, %v538, %v540
        %v544 = vsel %vm442, -1e+30, %v538
        %v545 = vsel %vm428, -1e+30, %v544
        %v546 = vsel %vm429, -1e+30, %v541
        %547 = vrot.lane.b32.xlu0 %v533, 127
        %v548 = vpop.permute.xlu0 %547
        %549 = vrot.lane.b32.xlu0 %v534, 127
        %v550 = vpop.permute.xlu0 %549
        %v551 = vsel %vm453, %v548, %v550
        %v554 = vsel %vm453, %v550, -1e+30
        %v555 = vsel %vm434, -1e+30, %v551
        %v556 = vsel %vm435, -1e+30, %v554
        %v557 = vmax.f32 %v533, %v545
        %v558 = vmax.f32 %v534, %v546
        %v559 = vmax.f32 %v557, %v555
        %v560 = vmax.f32 %v558, %v556
        %563 = vrot.lane.b32.xlu0 %v559, 16
        %v564 = vpop.permute.xlu0 %563
        %565 = vrot.lane.b32.xlu0 %v560, 16
        %v566 = vpop.permute.xlu0 %565
        %v567 = vsel %vm308, %v564, %v566
        %v570 = vsel %vm308, -1e+30, %v564
        %571 = vrot.lane.b32.xlu0 %v559, 112
        %v572 = vpop.permute.xlu0 %571
        %573 = vrot.lane.b32.xlu0 %v560, 112
        %v574 = vpop.permute.xlu0 %573
        %v575 = vsel %vm478, %v572, %v574
        %v578 = vsel %vm478, %v574, -1e+30
        %v579 = vmax.f32 %v559, %v570
        %v580 = vmax.f32 %v560, %v567
        %v581 = vmax.f32 %v579, %v575
        %v582 = vmax.f32 %v580, %v578
        %v583 = vld [vmem:[#allocation8] sm:$0xff]
        %v584 = vld [vmem:[#allocation8 + $0x8] sm:$0xff]
        %v585 = vld [vmem:[#allocation8 + $0x10] sm:$0xff]
        %v586 = vld [vmem:[#allocation8 + $0x18] sm:$0xff]
        %v587 = vld [vmem:[#allocation8 + $0x20] sm:$0xff]
        %v588 = vld [vmem:[#allocation8 + $0x28] sm:$0xff]
        %v589 = vld [vmem:[#allocation8 + $0x30] sm:$0xff]
        %v590 = vld [vmem:[#allocation8 + $0x38] sm:$0xff]
        %v591 = vld [vmem:[#allocation8 + $0x40] sm:$0xff]
        %v592 = vld [vmem:[#allocation8 + $0x48] sm:$0xff]
        %v593 = vld [vmem:[#allocation8 + $0x50] sm:$0xff]
        %v594 = vld [vmem:[#allocation8 + $0x58] sm:$0xff]
        %v595 = vld [vmem:[#allocation8 + $0x60] sm:$0xff]
        %v596 = vld [vmem:[#allocation8 + $0x68] sm:$0xff]
        %v597 = vld [vmem:[#allocation8 + $0x70] sm:$0xff]
        %v598 = vld [vmem:[#allocation8 + $0x78] sm:$0xff]
        %vm599 = vcmask 64512
        %v601 = vsel %vm599, %v587, 0
        %v604 = vsel %vm599, %v588, 0
        %v607 = vsel %vm599, %v589, 0
        %v610 = vsel %vm599, %v590, 0
        %612 = vmatprep.subr.mxu0 %v486
        %613 = vmatpush1.msra.mxu0 %v485
        %614 = vmatprep.subr.mxu0 0.0
        %615 = vmatpush1.msra.mxu0 0.0
        %616 = vmatprep.subr.mxu0 0.0
        %617 = vmatpush1.msra.mxu0 0.0
        %618 = vmatprep.subr.mxu0 0.0
        %619 = vmatpush1.msra.mxu0 0.0
        %620 = vmatprep.subr.mxu0 0.0
        %621 = vmatpush1.msra.mxu0 0.0
        %622 = vmatprep.subr.mxu0 0.0
        %623 = vmatpush1.msra.mxu0 0.0
        %624 = vmatprep.subr.mxu0 0.0
        %625 = vmatpush1.msra.mxu0 0.0
        %626 = vmatprep.subr.mxu0 0.0
        %627 = vmatpush1.msra.mxu0 0.0
        %628 = vmatprep.subr.mxu0 0.0
        %629 = vmatpush1.msra.mxu0 0.0
        %630 = vmatprep.subr.mxu0 0.0
        %631 = vmatpush1.msra.mxu0 0.0
        %632 = vmatprep.subr.mxu0 0.0
        %633 = vmatpush1.msra.mxu0 0.0
        %634 = vmatprep.subr.mxu0 0.0
        %635 = vmatpush1.msra.mxu0 0.0
        %636 = vmatprep.subr.mxu0 0.0
        %637 = vmatpush1.msra.mxu0 0.0
        %638 = vmatprep.subr.mxu0 0.0
        %639 = vmatpush1.msra.mxu0 0.0
        %640 = vmatprep.subr.mxu0 0.0
        %641 = vmatpush1.msra.mxu0 0.0
        %642 = vmatprep.subr.mxu0 0.0
        %643 = vmatpush1.msra.mxu0 0.0
        %644 = vmatprep.subr.mxu0 0.0
        %645 = vmatpush1.msra.mxu0 0.0
        %646 = vmatprep.subr.mxu0 0.0
        %647 = vmatpush1.msra.mxu0 0.0
        %648 = vmatprep.subr.mxu0 0.0
        %649 = vmatpush1.msra.mxu0 0.0
        %650 = vmatprep.subr.mxu0 0.0
        %651 = vmatpush1.msra.mxu0 0.0
        %652 = vmatprep.subr.mxu0 0.0
        %653 = vmatpush1.msra.mxu0 0.0
        %654 = vmatprep.subr.mxu0 0.0
        %655 = vmatpush1.msra.mxu0 0.0
        %656 = vmatprep.subr.mxu0 0.0
        %657 = vmatpush1.msra.mxu0 0.0
        %658 = vmatprep.subr.mxu0 0.0
        %659 = vmatpush1.msra.mxu0 0.0
        %660 = vmatprep.subr.mxu0 0.0
        %661 = vmatpush1.msra.mxu0 0.0
        %662 = vmatprep.subr.mxu0 0.0
        %663 = vmatpush1.msra.mxu0 0.0
        %664 = vmatprep.subr.mxu0 0.0
        %665 = vmatpush1.msra.mxu0 0.0
        %666 = vmatprep.subr.mxu0 0.0
        %667 = vmatpush1.msra.mxu0 0.0
        %668 = vmatprep.subr.mxu0 0.0
        %669 = vmatpush1.msra.mxu0 0.0
        %670 = vmatprep.subr.mxu0 0.0
        %671 = vmatpush1.msra.mxu0 0.0
        %672 = vmatprep.subr.mxu0 0.0
        %673 = vmatpush1.msra.mxu0 0.0
        %674 = vmatprep.subr.mxu0 0.0
        %675 = vmatpush1.msra.mxu0 0.0
        %676 = vmatprep.mubr.f32.mxu0 0.0
        %677 = vmatmul.mubr.f32.gmra.mrb[0].mxu0 %v601
        %v678 = vpop.f32.mrb[0].mxu0
        %v679 = vadd.f32 0.0, %v678
        %v680 = vpop.f32.mrb[0].mxu0
        %v681 = vadd.f32 0.0, %v680
        %682 = vmatprep.mubr.f32.mxu0 0.0
        %683 = vmatmul.mubr.f32.gmra.mrb[0].mxu0 %v604
        %v684 = vpop.f32.mrb[0].mxu0
        %v685 = vadd.f32 0.0, %v684
        %v686 = vpop.f32.mrb[0].mxu0
        %v687 = vadd.f32 0.0, %v686
        %688 = vmatprep.mubr.f32.mxu0 0.0
        %689 = vmatmul.mubr.f32.gmra.mrb[0].mxu0 %v607
        %v690 = vpop.f32.mrb[0].mxu0
        %v691 = vadd.f32 0.0, %v690
        %v692 = vpop.f32.mrb[0].mxu0
        %v693 = vadd.f32 0.0, %v692
        %694 = vmatprep.mubr.f32.mxu0 0.0
        %695 = vmatmul.mubr.f32.gmra.mrb[0].mxu0 %v610
        %v696 = vpop.f32.mrb[0].mxu0
        %v697 = vadd.f32 0.0, %v696
        %v698 = vpop.f32.mrb[0].mxu0
        %v699 = vadd.f32 0.0, %v698
        %700 = vdwg.mxu0
        %v702 = vsel %vm599, %v583, 0
        %v705 = vsel %vm599, %v584, 0
        %v708 = vsel %vm599, %v585, 0
        %v711 = vsel %vm599, %v586, 0
        %713 = vmatprep.subr.mxu0 %v396
        %714 = vmatpush1.msra.mxu0 %v395
        %715 = vmatprep.subr.mxu0 0.0
        %716 = vmatpush1.msra.mxu0 0.0
        %717 = vmatprep.subr.mxu0 0.0
        %718 = vmatpush1.msra.mxu0 0.0
        %719 = vmatprep.subr.mxu0 0.0
        %720 = vmatpush1.msra.mxu0 0.0
        %721 = vmatprep.subr.mxu0 0.0
        %722 = vmatpush1.msra.mxu0 0.0
        %723 = vmatprep.subr.mxu0 0.0
        %724 = vmatpush1.msra.mxu0 0.0
        %725 = vmatprep.subr.mxu0 0.0
        %726 = vmatpush1.msra.mxu0 0.0
        %727 = vmatprep.subr.mxu0 0.0
        %728 = vmatpush1.msra.mxu0 0.0
        %729 = vmatprep.subr.mxu0 0.0
        %730 = vmatpush1.msra.mxu0 0.0
        %731 = vmatprep.subr.mxu0 0.0
        %732 = vmatpush1.msra.mxu0 0.0
        %733 = vmatprep.subr.mxu0 0.0
        %734 = vmatpush1.msra.mxu0 0.0
        %735 = vmatprep.subr.mxu0 0.0
        %736 = vmatpush1.msra.mxu0 0.0
        %737 = vmatprep.subr.mxu0 0.0
        %738 = vmatpush1.msra.mxu0 0.0
        %739 = vmatprep.subr.mxu0 0.0
        %740 = vmatpush1.msra.mxu0 0.0
        %741 = vmatprep.subr.mxu0 0.0
        %742 = vmatpush1.msra.mxu0 0.0
        %743 = vmatprep.subr.mxu0 0.0
        %744 = vmatpush1.msra.mxu0 0.0
        %745 = vmatprep.subr.mxu0 0.0
        %746 = vmatpush1.msra.mxu0 0.0
        %747 = vmatprep.subr.mxu0 0.0
        %748 = vmatpush1.msra.mxu0 0.0
        %749 = vmatprep.subr.mxu0 0.0
        %750 = vmatpush1.msra.mxu0 0.0
        %751 = vmatprep.subr.mxu0 0.0
        %752 = vmatpush1.msra.mxu0 0.0
        %753 = vmatprep.subr.mxu0 0.0
        %754 = vmatpush1.msra.mxu0 0.0
        %755 = vmatprep.subr.mxu0 0.0
        %756 = vmatpush1.msra.mxu0 0.0
        %757 = vmatprep.subr.mxu0 0.0
        %758 = vmatpush1.msra.mxu0 0.0
        %759 = vmatprep.subr.mxu0 0.0
        %760 = vmatpush1.msra.mxu0 0.0
        %761 = vmatprep.subr.mxu0 0.0
        %762 = vmatpush1.msra.mxu0 0.0
        %763 = vmatprep.subr.mxu0 0.0
        %764 = vmatpush1.msra.mxu0 0.0
        %765 = vmatprep.subr.mxu0 0.0
        %766 = vmatpush1.msra.mxu0 0.0
        %767 = vmatprep.subr.mxu0 0.0
        %768 = vmatpush1.msra.mxu0 0.0
        %769 = vmatprep.subr.mxu0 0.0
        %770 = vmatpush1.msra.mxu0 0.0
        %771 = vmatprep.subr.mxu0 0.0
        %772 = vmatpush1.msra.mxu0 0.0
        %773 = vmatprep.subr.mxu0 0.0
        %774 = vmatpush1.msra.mxu0 0.0
        %775 = vmatprep.subr.mxu0 0.0
        %776 = vmatpush1.msra.mxu0 0.0
        %777 = vmatprep.mubr.f32.mxu0 0.0
        %778 = vmatmul.mubr.f32.gmra.mrb[0].mxu0 %v702
        %v779 = vpop.f32.mrb[0].mxu0
        %v780 = vadd.f32 %v679, %v779
        %v781 = vpop.f32.mrb[0].mxu0
        %v782 = vadd.f32 %v681, %v781
        %783 = vmatprep.mubr.f32.mxu0 0.0
        %784 = vmatmul.mubr.f32.gmra.mrb[0].mxu0 %v705
        %v785 = vpop.f32.mrb[0].mxu0
        %v786 = vadd.f32 %v685, %v785
        %v787 = vpop.f32.mrb[0].mxu0
        %v788 = vadd.f32 %v687, %v787
        %789 = vmatprep.mubr.f32.mxu0 0.0
        %790 = vmatmul.mubr.f32.gmra.mrb[0].mxu0 %v708
        %v791 = vpop.f32.mrb[0].mxu0
        %v792 = vadd.f32 %v691, %v791
        %v793 = vpop.f32.mrb[0].mxu0
        %v794 = vadd.f32 %v693, %v793
        %795 = vmatprep.mubr.f32.mxu0 0.0
        %796 = vmatmul.mubr.f32.gmra.mrb[0].mxu0 %v711
        %v797 = vpop.f32.mrb[0].mxu0
        %v798 = vadd.f32 %v697, %v797
        %v799 = vpop.f32.mrb[0].mxu0
        %v800 = vadd.f32 %v699, %v799
        %801 = vdwg.mxu0
        %v803 = vsel %vm599, %v591, 0
        %v806 = vsel %vm599, %v592, 0
        %v809 = vsel %vm599, %v593, 0
        %v812 = vsel %vm599, %v594, 0
        %814 = vmatprep.subr.mxu0 %v534
        %815 = vmatpush1.msra.mxu0 %v533
        %816 = vmatprep.subr.mxu0 0.0
        %817 = vmatpush1.msra.mxu0 0.0
        %818 = vmatprep.subr.mxu0 0.0
        %819 = vmatpush1.msra.mxu0 0.0
        %820 = vmatprep.subr.mxu0 0.0
        %821 = vmatpush1.msra.mxu0 0.0
        %822 = vmatprep.subr.mxu0 0.0
        %823 = vmatpush1.msra.mxu0 0.0
        %824 = vmatprep.subr.mxu0 0.0
        %825 = vmatpush1.msra.mxu0 0.0
        %826 = vmatprep.subr.mxu0 0.0
        %827 = vmatpush1.msra.mxu0 0.0
        %828 = vmatprep.subr.mxu0 0.0
        %829 = vmatpush1.msra.mxu0 0.0
        %830 = vmatprep.subr.mxu0 0.0
        %831 = vmatpush1.msra.mxu0 0.0
        %832 = vmatprep.subr.mxu0 0.0
        %833 = vmatpush1.msra.mxu0 0.0
        %834 = vmatprep.subr.mxu0 0.0
        %835 = vmatpush1.msra.mxu0 0.0
        %836 = vmatprep.subr.mxu0 0.0
        %837 = vmatpush1.msra.mxu0 0.0
        %838 = vmatprep.subr.mxu0 0.0
        %839 = vmatpush1.msra.mxu0 0.0
        %840 = vmatprep.subr.mxu0 0.0
        %841 = vmatpush1.msra.mxu0 0.0
        %842 = vmatprep.subr.mxu0 0.0
        %843 = vmatpush1.msra.mxu0 0.0
        %844 = vmatprep.subr.mxu0 0.0
        %845 = vmatpush1.msra.mxu0 0.0
        %846 = vmatprep.subr.mxu0 0.0
        %847 = vmatpush1.msra.mxu0 0.0
        %848 = vmatprep.subr.mxu0 0.0
        %849 = vmatpush1.msra.mxu0 0.0
        %850 = vmatprep.subr.mxu0 0.0
        %851 = vmatpush1.msra.mxu0 0.0
        %852 = vmatprep.subr.mxu0 0.0
        %853 = vmatpush1.msra.mxu0 0.0
        %854 = vmatprep.subr.mxu0 0.0
        %855 = vmatpush1.msra.mxu0 0.0
        %856 = vmatprep.subr.mxu0 0.0
        %857 = vmatpush1.msra.mxu0 0.0
        %858 = vmatprep.subr.mxu0 0.0
        %859 = vmatpush1.msra.mxu0 0.0
        %860 = vmatprep.subr.mxu0 0.0
        %861 = vmatpush1.msra.mxu0 0.0
        %862 = vmatprep.subr.mxu0 0.0
        %863 = vmatpush1.msra.mxu0 0.0
        %864 = vmatprep.subr.mxu0 0.0
        %865 = vmatpush1.msra.mxu0 0.0
        %866 = vmatprep.subr.mxu0 0.0
        %867 = vmatpush1.msra.mxu0 0.0
        %868 = vmatprep.subr.mxu0 0.0
        %869 = vmatpush1.msra.mxu0 0.0
        %870 = vmatprep.subr.mxu0 0.0
        %871 = vmatpush1.msra.mxu0 0.0
        %872 = vmatprep.subr.mxu0 0.0
        %873 = vmatpush1.msra.mxu0 0.0
        %874 = vmatprep.subr.mxu0 0.0
        %875 = vmatpush1.msra.mxu0 0.0
        %876 = vmatprep.subr.mxu0 0.0
        %877 = vmatpush1.msra.mxu0 0.0
        %878 = vmatprep.mubr.f32.mxu0 0.0
        %879 = vmatmul.mubr.f32.gmra.mrb[0].mxu0 %v803
        %v880 = vpop.f32.mrb[0].mxu0
        %v881 = vadd.f32 0.0, %v880
        %v882 = vpop.f32.mrb[0].mxu0
        %v883 = vadd.f32 0.0, %v882
        %884 = vmatprep.mubr.f32.mxu0 0.0
        %885 = vmatmul.mubr.f32.gmra.mrb[0].mxu0 %v806
        %v886 = vpop.f32.mrb[0].mxu0
        %v887 = vadd.f32 0.0, %v886
        %v888 = vpop.f32.mrb[0].mxu0
        %v889 = vadd.f32 0.0, %v888
        %890 = vmatprep.mubr.f32.mxu0 0.0
        %891 = vmatmul.mubr.f32.gmra.mrb[0].mxu0 %v809
        %v892 = vpop.f32.mrb[0].mxu0
        %v893 = vadd.f32 0.0, %v892
        %v894 = vpop.f32.mrb[0].mxu0
        %v895 = vadd.f32 0.0, %v894
        %896 = vmatprep.mubr.f32.mxu0 0.0
        %897 = vmatmul.mubr.f32.gmra.mrb[0].mxu0 %v812
        %v898 = vpop.f32.mrb[0].mxu0
        %v899 = vadd.f32 0.0, %v898
        %v900 = vpop.f32.mrb[0].mxu0
        %v901 = vadd.f32 0.0, %v900
        %902 = vdwg.mxu0
        %v903 = vadd.f32 %v780, %v881
        %v904 = vadd.f32 %v782, %v883
        %v905 = vadd.f32 %v786, %v887
        %v906 = vadd.f32 %v788, %v889
        %v907 = vadd.f32 %v792, %v893
        %v908 = vadd.f32 %v794, %v895
        %v909 = vadd.f32 %v798, %v899
        %v910 = vadd.f32 %v800, %v901
        %v912 = vsel %vm599, %v595, 0
        %v915 = vsel %vm599, %v596, 0
        %v918 = vsel %vm599, %v597, 0
        %v921 = vsel %vm599, %v598, 0
        %923 = vmatprep.subr.mxu0 %v582
        %924 = vmatpush1.msra.mxu0 %v581
        %925 = vmatprep.subr.mxu0 0.0
        %926 = vmatpush1.msra.mxu0 0.0
        %927 = vmatprep.subr.mxu0 0.0
        %928 = vmatpush1.msra.mxu0 0.0
        %929 = vmatprep.subr.mxu0 0.0
        %930 = vmatpush1.msra.mxu0 0.0
        %931 = vmatprep.subr.mxu0 0.0
        %932 = vmatpush1.msra.mxu0 0.0
        %933 = vmatprep.subr.mxu0 0.0
        %934 = vmatpush1.msra.mxu0 0.0
        %935 = vmatprep.subr.mxu0 0.0
        %936 = vmatpush1.msra.mxu0 0.0
        %937 = vmatprep.subr.mxu0 0.0
        %938 = vmatpush1.msra.mxu0 0.0
        %939 = vmatprep.subr.mxu0 0.0
        %940 = vmatpush1.msra.mxu0 0.0
        %941 = vmatprep.subr.mxu0 0.0
        %942 = vmatpush1.msra.mxu0 0.0
        %943 = vmatprep.subr.mxu0 0.0
        %944 = vmatpush1.msra.mxu0 0.0
        %945 = vmatprep.subr.mxu0 0.0
        %946 = vmatpush1.msra.mxu0 0.0
        %947 = vmatprep.subr.mxu0 0.0
        %948 = vmatpush1.msra.mxu0 0.0
        %949 = vmatprep.subr.mxu0 0.0
        %950 = vmatpush1.msra.mxu0 0.0
        %951 = vmatprep.subr.mxu0 0.0
        %952 = vmatpush1.msra.mxu0 0.0
        %953 = vmatprep.subr.mxu0 0.0
        %954 = vmatpush1.msra.mxu0 0.0
        %955 = vmatprep.subr.mxu0 0.0
        %956 = vmatpush1.msra.mxu0 0.0
        %957 = vmatprep.subr.mxu0 0.0
        %958 = vmatpush1.msra.mxu0 0.0
        %959 = vmatprep.subr.mxu0 0.0
        %960 = vmatpush1.msra.mxu0 0.0
        %961 = vmatprep.subr.mxu0 0.0
        %962 = vmatpush1.msra.mxu0 0.0
        %963 = vmatprep.subr.mxu0 0.0
        %964 = vmatpush1.msra.mxu0 0.0
        %965 = vmatprep.subr.mxu0 0.0
        %966 = vmatpush1.msra.mxu0 0.0
        %967 = vmatprep.subr.mxu0 0.0
        %968 = vmatpush1.msra.mxu0 0.0
        %969 = vmatprep.subr.mxu0 0.0
        %970 = vmatpush1.msra.mxu0 0.0
        %971 = vmatprep.subr.mxu0 0.0
        %972 = vmatpush1.msra.mxu0 0.0
        %973 = vmatprep.subr.mxu0 0.0
        %974 = vmatpush1.msra.mxu0 0.0
        %975 = vmatprep.subr.mxu0 0.0
        %976 = vmatpush1.msra.mxu0 0.0
        %977 = vmatprep.subr.mxu0 0.0
        %978 = vmatpush1.msra.mxu0 0.0
        %979 = vmatprep.subr.mxu0 0.0
        %980 = vmatpush1.msra.mxu0 0.0
        %981 = vmatprep.subr.mxu0 0.0
        %982 = vmatpush1.msra.mxu0 0.0
        %983 = vmatprep.subr.mxu0 0.0
        %984 = vmatpush1.msra.mxu0 0.0
        %985 = vmatprep.subr.mxu0 0.0
        %986 = vmatpush1.msra.mxu0 0.0
        %987 = vmatprep.mubr.f32.mxu0 0.0
        %988 = vmatmul.mubr.f32.gmra.mrb[0].mxu0 %v912
        %v989 = vpop.f32.mrb[0].mxu0
        %v990 = vadd.f32 0.0, %v989
        %v991 = vpop.f32.mrb[0].mxu0
        %v992 = vadd.f32 0.0, %v991
        %993 = vmatprep.mubr.f32.mxu0 0.0
        %994 = vmatmul.mubr.f32.gmra.mrb[0].mxu0 %v915
        %v995 = vpop.f32.mrb[0].mxu0
        %v996 = vadd.f32 0.0, %v995
        %v997 = vpop.f32.mrb[0].mxu0
        %v998 = vadd.f32 0.0, %v997
        %999 = vmatprep.mubr.f32.mxu0 0.0
        %1000 = vmatmul.mubr.f32.gmra.mrb[0].mxu0 %v918
        %v1001 = vpop.f32.mrb[0].mxu0
        %v1002 = vadd.f32 0.0, %v1001
        %v1003 = vpop.f32.mrb[0].mxu0
        %v1004 = vadd.f32 0.0, %v1003
        %1005 = vmatprep.mubr.f32.mxu0 0.0
        %1006 = vmatmul.mubr.f32.gmra.mrb[0].mxu0 %v921
        %v1007 = vpop.f32.mrb[0].mxu0
        %v1008 = vadd.f32 0.0, %v1007
        %v1009 = vpop.f32.mrb[0].mxu0
        %v1010 = vadd.f32 0.0, %v1009
        %1011 = vdwg.mxu0
        %v1012 = vadd.f32 %v903, %v990
        %v1013 = vadd.f32 %v904, %v992
        %v1014 = vadd.f32 %v905, %v996
        %v1015 = vadd.f32 %v906, %v998
        %v1016 = vadd.f32 %v907, %v1002
        %v1017 = vadd.f32 %v908, %v1004
        %v1018 = vadd.f32 %v909, %v1008
        %v1019 = vadd.f32 %v910, %v1010
        %v1020 = vld [vmem:[#allocation10] sm:$0xff]
        %v1021 = vld [vmem:[#allocation10 + $0x8] sm:$0xff]
        %v1022 = vld [vmem:[#allocation10 + $0x10] sm:$0xff]
        %v1023 = vld [vmem:[#allocation10 + $0x18] sm:$0xff]
        %1025 = vset.pattern.permute.xlu0 0
        %1026 = vperm.xlu0 %1025, %v1020
        %v1027 = vpop.permute.xlu0 %1026
        %1030 = vset.pattern.permute.xlu0 0
        %1031 = vperm.xlu0 %1030, %v1021
        %v1032 = vpop.permute.xlu0 %1031
        %1035 = vset.pattern.permute.xlu0 0
        %1036 = vperm.xlu0 %1035, %v1022
        %v1037 = vpop.permute.xlu0 %1036
        %1040 = vset.pattern.permute.xlu0 0
        %1041 = vperm.xlu0 %1040, %v1023
        %v1042 = vpop.permute.xlu0 %1041
        %v1044 = vadd.f32 %v1012, %v1027
        %v1045 = vadd.f32 %v1013, %v1027
        %v1046 = vadd.f32 %v1014, %v1032
        %v1047 = vadd.f32 %v1015, %v1032
        %v1048 = vadd.f32 %v1016, %v1037
        %v1049 = vadd.f32 %v1017, %v1037
        %v1050 = vadd.f32 %v1018, %v1042
        %v1051 = vadd.f32 %v1019, %v1042
        %v1052 = vxor.u32 %v1044, 2147483648
        %v1053 = vxor.u32 %v1045, 2147483648
        %v1054 = vxor.u32 %v1046, 2147483648
        %v1055 = vxor.u32 %v1047, 2147483648
        %v1056 = vxor.u32 %v1048, 2147483648
        %v1057 = vxor.u32 %v1049, 2147483648
        %v1058 = vxor.u32 %v1050, 2147483648
        %v1059 = vxor.u32 %v1051, 2147483648
        %v1060 = vmul.f32 %v1052, 1.442695
        %v1061 = vpow.pop %v1060
        %v1062 = vmul.f32 %v1053, 1.442695
        %v1063 = vpow.pop %v1062
        %v1064 = vmul.f32 %v1054, 1.442695
        %v1065 = vpow.pop %v1064
        %v1066 = vmul.f32 %v1055, 1.442695
        %v1067 = vpow.pop %v1066
        %v1068 = vmul.f32 %v1056, 1.442695
        %v1069 = vpow.pop %v1068
        %v1070 = vmul.f32 %v1057, 1.442695
        %v1071 = vpow.pop %v1070
        %v1072 = vmul.f32 %v1058, 1.442695
        %v1073 = vpow.pop %v1072
        %v1074 = vmul.f32 %v1059, 1.442695
        %v1075 = vpow.pop %v1074
        %v1076 = vadd.f32 %v1061, 1.0
        %v1077 = vadd.f32 %v1063, 1.0
        %v1078 = vadd.f32 %v1065, 1.0
        %v1079 = vadd.f32 %v1067, 1.0
        %v1080 = vadd.f32 %v1069, 1.0
        %v1081 = vadd.f32 %v1071, 1.0
        %v1082 = vadd.f32 %v1073, 1.0
        %v1083 = vadd.f32 %v1075, 1.0
        %v1084 = vrcp.pop %v1076
        %v1085 = vmul.f32 1.0, %v1084
        %v1086 = vrcp.pop %v1077
        %v1087 = vmul.f32 1.0, %v1086
        %v1088 = vrcp.pop %v1078
        %v1089 = vmul.f32 1.0, %v1088
        %v1090 = vrcp.pop %v1079
        %v1091 = vmul.f32 1.0, %v1090
        %v1092 = vrcp.pop %v1080
        %v1093 = vmul.f32 1.0, %v1092
        %v1094 = vrcp.pop %v1081
        %v1095 = vmul.f32 1.0, %v1094
        %v1096 = vrcp.pop %v1082
        %v1097 = vmul.f32 1.0, %v1096
        %v1098 = vrcp.pop %v1083
        %v1099 = vmul.f32 1.0, %v1098
        %v1100 = vmul.f32 %v1044, %v1085
        %v1101 = vmul.f32 %v1045, %v1087
        %v1102 = vmul.f32 %v1046, %v1089
        %v1103 = vmul.f32 %v1047, %v1091
        %v1104 = vmul.f32 %v1048, %v1093
        %v1105 = vmul.f32 %v1049, %v1095
        %v1106 = vmul.f32 %v1050, %v1097
        %v1107 = vmul.f32 %v1051, %v1099
        %1108 = vst [vmem:[%s296] sm:$0xff] %v1100
        %1109 = vst [vmem:[%s296 + $0x8] sm:$0xff] %v1101
        %1110 = vst [vmem:[%s296 + $0x10] sm:$0xff] %v1102
        %1111 = vst [vmem:[%s296 + $0x18] sm:$0xff] %v1103
        %1112 = vst [vmem:[%s296 + $0x20] sm:$0xff] %v1104
        %1113 = vst [vmem:[%s296 + $0x28] sm:$0xff] %v1105
        %1114 = vst [vmem:[%s296 + $0x30] sm:$0xff] %v1106
        %1115 = vst [vmem:[%s296 + $0x38] sm:$0xff] %v1107
        %s1116 = sand.u32 %s142, 1
        %s1117 = scalar_lea.sflag [#allocation4], %s1116
        %s1118 = sand.u32 %s142, 1
        %s1119 = smul.addr %s1118, 64
        %s1120 = scalar_lea.vmem [#allocation11], %s1119
        // Predicated region
        $region61: #{tpu_custom_call.1} parent=39 // pred_check
          %p1121 = pneg %p152
        $region62: #{tpu_custom_call.1} parent=39 // pred_check_branch
          %1123 = sbr.rel (%p1121) target = $region64
        $region63: #{tpu_custom_call.1} parent=39 // pred_region
          %s1125 = ssub.s32 1024, 1024
          %1126 = vsyncadd %s1117, %s1125
          %s1127 = smul.addr %s24, 8
          %s1128 = smul.addr %s1127, 128
          %s1129 = scalar_lea.hbm %s5, %s1128
          %s1130 = sshll.u32 %s1120, 4
          %s1131 = int_to_ptr.vmem [resolvable:$true] %s1130
          %1136 = dma.vmem_to_hbm [thread:$0]  %s1131, 1024, %s1129, %s1117, 256, 256, 16
        $region64: #{tpu_custom_call.1} parent=39 // pred_fallthru
          _
      $region40: #{tpu_custom_call.1} parent=5 // pred_fallthru
        _
      %p1137 = scmp.le.s32.totalorder 2, %s19
      // Predicated region
      $region65: #{tpu_custom_call.1} parent=5 // pred_check
        %p1138 = pneg %p1137
      $region66: #{tpu_custom_call.1} parent=5 // pred_check_branch
        %1140 = sbr.rel (%p1138) target = $region68
      $region67: #{tpu_custom_call.1} parent=5 // pred_region
        %s1141 = ssub.s32 %s19, 2
        // Predicated region
        $region69: #{tpu_custom_call.1} parent=67 // pred_check
          %p1142 = pneg %p158
        $region70: #{tpu_custom_call.1} parent=67 // pred_check_branch
          %1144 = sbr.rel (%p1142) target = $region72
        $region71: #{tpu_custom_call.1} parent=67 // pred_region
          %s1145 = sand.u32 %s143, 1
          %s1146 = scalar_lea.sflag [#allocation4], %s1145
          %s1147 = sand.u32 %s143, 1
          %s1148 = smul.addr %s1147, 64
          %s1149 = scalar_lea.vmem [#allocation11], %s1148
          %1150 = dma.done %s1146, 1024
        $region72: #{tpu_custom_call.1} parent=67 // pred_fallthru
          _
      $region68: #{tpu_custom_call.1} parent=5 // pred_fallthru
        _
    $region6: #{tpu_custom_call.1} parent=1 // loop_footer
      %s23 = sadd.s32 1, %s19
    $region7: #{tpu_custom_call.1} parent=1 // loop_footer_branch
      %18 = sbr.rel target = $region3
    $region8: #{tpu_custom_call.1} parent=1 // loop_exit
      _
    %1151 = vsyncpa [#allocation3], 1
    %s1152 = scalar_lea.sflag [#allocation3], 1
    %1153 = vsyncpa %s1152, 1
    %1154 = vsyncpa [#allocation6], 1
    %1155 = vsyncpa [#allocation9], 1
    %1156 = vsyncpa [#allocation4], 1
    %s1157 = scalar_lea.sflag [#allocation4], 1
    %1158 = vsyncpa %s1157, 1

</llo_original>
